<compile_context>
chip_gen: v5e
topology: v5e:2x2
jax: 0.10.0
libtpu: 0.0.40
codegen_flags: <defaults>
</compile_context>

<pallas_src>
import functools
import math

import numpy as np
import jax
import jax.numpy as jnp
from jax.experimental import pallas as pl
from jax.experimental.pallas import tpu as pltpu


# ----------------------------------------------------------------------------
# Genome -> architecture mapping (plain Python/NumPy glue, mirrors the module)
# ----------------------------------------------------------------------------
def map_shape(gene):
    inds = np.digitize(np.array([gene]), np.array([0.0, 0.5]))
    if inds[0] - 1 == 0:
        return "SYMMETRICAL"
    elif inds[0] - 1 == 1:
        return "A-SYMMETRICAL"
    raise ValueError("gene out of range")


def map_layer_step(gene, dataset_shape):
    bins = []
    value = 1.0 / dataset_shape[1]
    step = value
    for _ in range(dataset_shape[1]):
        bins.append(step)
        step += value
    bins[-1] = 1.01
    return int(np.digitize(np.array([gene]), np.array(bins))[0])


def map_num_layers(gene, layer_step, dataset_shape):
    if layer_step == 0:
        return dataset_shape[1]
    max_layers = round(dataset_shape[1] / layer_step)
    if max_layers == 1:
        return 1
    bins = []
    value = 1.0 / max_layers
    step = value
    for _ in range(max_layers):
        bins.append(step)
        step += value
    bins[-1] = 1.01
    return int(np.digitize(np.array([gene]), np.array(bins))[0])


def map_activation(gene):
    bins = np.array([0.0, 0.125, 0.25, 0.375, 0.5, 0.625, 0.75, 0.875, 1.01])
    idx = int(np.digitize(np.array([gene]), bins)[0]) - 1
    table = {
        0: ("ELU", jax.nn.elu),
        1: ("RELU", jax.nn.relu),
        2: ("Leaky RELU", lambda x: jax.nn.leaky_relu(x, 0.01)),
        # TODO(synk): F.rrelu is stochastic in train mode; eval-mode equivalent
        # is leaky_relu with the mean slope (1/8 + 1/3)/2.
        3: ("RRELU", lambda x: jax.nn.leaky_relu(x, (1.0 / 8 + 1.0 / 3) / 2)),
        4: ("SELU", jax.nn.selu),
        5: ("CELU", jax.nn.celu),
        6: ("GELU", jax.nn.gelu),
        7: ("TANH", jnp.tanh),
    }
    if idx not in table:
        raise ValueError("gene out of range")
    return table[idx]


def generate_layer_dims(shape, layers, dataset_shape, layer_step):
    """SYMMETRICAL path of generate_autoencoder -> list of (in, out) per layer."""
    assert shape == "SYMMETRICAL", "A-SYMMETRICAL uses random.randint; fixed to SYM here"
    enc, dec = [], []
    i = dataset_shape[1]
    z = dataset_shape[1] - layer_step
    while layers != 0:
        if z < 1:
            enc.append((i, z + 1))
            dec.insert(0, (z + 1, i))
            break
        enc.append((i, z))
        dec.insert(0, (z, i))
        i -= layer_step
        z -= layer_step
        layers -= 1
    return enc + dec  # encode then decode, activation after every layer


# ----------------------------------------------------------------------------
# Pallas kernel: fused Linear+activation chain on a transposed batch tile
# ----------------------------------------------------------------------------
def ae_mlp_kernel(*refs, n_layers, act):
    # refs = (xT_ref, w0, b0, w1, b1, ..., w_{L-1}, b_{L-1}, outT_ref)
    xT_ref = refs[0]
    outT_ref = refs[-1]
    h = xT_ref[...]                        # (D_in, TILE_N): batch on the lane axis
    for l in range(n_layers):
        w = refs[1 + 2 * l][...]           # (out, in)  -- torch nn.Linear layout
        b = refs[2 + 2 * l][...]           # (out, 1)
        # h^T = W @ x^T + b : MXU N-dim = TILE_N (multiple of 128), f32 accumulate.
        h = jnp.dot(w, h, preferred_element_type=jnp.float32) + b
        h = act(h)                         # activation kept in f32 (EUP path)
    outT_ref[...] = h.astype(outT_ref.dtype)


def _round_up(v, m):
    return ((v + m - 1) // m) * m


def autoencoder_forward(x, params, act, *, tile_n=512):
    """x: [N, n_features, seq_len]; params: list of (w(out,in), b(out,1)).

    Returns [reconstructed (N, n_features*seq_len), original x] like forward().
    """
    n = x.shape[0]
    x_flat = x.reshape(n, -1)              # encode(): x.view(x.size(0), -1)
    d_in = x_flat.shape[1]
    d_out = params[-1][0].shape[0]
    assert params[0][0].shape[1] == d_in, "first Linear in_features must match D"

    # Batch tile: multiple of 128 so it fills the lane axis; capped at tile_n to
    # keep the live activation chain in a handful of vregs (well under VMEM caps
    # on v5e/v6e/v7x -- 16-sublane x TILE_N-lane f32 tiles are a few KiB each).
    tile = min(tile_n, _round_up(max(n, 1), 128))
    n_pad = _round_up(n, tile)

    xT = x_flat.T                          # (D_in, N)
    if n_pad != n:
        xT = jnp.pad(xT, ((0, 0), (0, n_pad - n)))

    flat = []
    for w, b in params:
        flat.extend([w, b])

    # Input tile streams over the batch grid; weights/biases (a few KiB total)
    # use constant index_maps so they stay VMEM-resident across all grid steps.
    in_specs = [pl.BlockSpec((d_in, tile), lambda i: (0, i))]
    for a in flat:
        in_specs.append(pl.BlockSpec(a.shape, lambda i: (0, 0)))
    out_spec = pl.BlockSpec((d_out, tile), lambda i: (0, i))

    flops = int(2 * n_pad * sum(w.shape[0] * w.shape[1] for w, _ in params))
    transcendentals = int(n_pad * sum(w.shape[0] for w, _ in params))
    bytes_accessed = int(4 * (n_pad * (d_in + d_out)
                              + sum(w.size + b.size for w, b in params)))

    kernel = functools.partial(ae_mlp_kernel, n_layers=len(params), act=act)
    reconT = pl.pallas_call(
        kernel,
        out_shape=jax.ShapeDtypeStruct((d_out, n_pad), x.dtype),
        grid=(n_pad // tile,),
        in_specs=in_specs,
        out_specs=out_spec,
        compiler_params=pltpu.CompilerParams(
            dimension_semantics=("parallel",),   # megacore sharding on v7x
        ),
        cost_estimate=pl.CostEstimate(
            flops=flops,
            transcendentals=transcendentals,
            bytes_accessed=bytes_accessed,
        ),
    )(xT, *flat)

    recon = reconT[:, :n].T                # back to [N, D_out]
    return [recon, x]


# ----------------------------------------------------------------------------
# Deterministic parameter init (PyTorch nn.Linear-style uniform, torch layout)
# ----------------------------------------------------------------------------
def init_params(layer_dims, key):
    params = []
    for (fin, fout) in layer_dims:
        key, kw, kb = jax.random.split(key, 3)
        bound = 1.0 / math.sqrt(fin)
        w = jax.random.uniform(kw, (fout, fin), jnp.float32, -bound, bound)
        b = jax.random.uniform(kb, (fout, 1), jnp.float32, -bound, bound)
        params.append((w, b))
    return params


def reference_forward(x, params, act):
    h = x.reshape(x.shape[0], -1)
    for w, b in params:
        h = act(h @ w.T + b.T)
    return h


if __name__ == "__main__":
    # model_params / data_params (small, consistent with the module)
    n_features, seq_len, batch_size = 1, 16, 2
    dataset_shape = [n_features, seq_len]

    # solution genome -> SYMMETRICAL, layer_step=4, num_layers=3, TANH
    solution = [0.3, 0.25, 0.8, 0.9, 0.5, 0.001, 0.1]
    topo = map_shape(solution[0])
    layer_step = map_layer_step(solution[1], dataset_shape)
    num_layers = map_num_layers(solution[2], layer_step, dataset_shape)
    act_name, act = map_activation(solution[3])
    layer_dims = generate_layer_dims(topo, num_layers, dataset_shape, layer_step)
    # -> encoder 16->12->8->4, decoder 4->8->12->16, activation after every layer

    key = jax.random.PRNGKey(0)
    key, kx = jax.random.split(key)
    x = jax.random.normal(kx, (batch_size, n_features, seq_len), jnp.float32)
    params = init_params(layer_dims, key)

    recon, orig = autoencoder_forward(x, params, act)
    recon = jax.block_until_ready(recon)
    ref = reference_forward(x, params, act)
    assert recon.shape == (batch_size, n_features * seq_len)
    np.testing.assert_allclose(np.asarray(recon), np.asarray(ref), rtol=1e-5, atol=1e-5)

    # Multi-tile path: batch that does not divide the tile (3 pipelined grid
    # steps, last tile lane-padded) to exercise the gridded/pipelined code path.
    key, kx2 = jax.random.split(key)
    x_big = jax.random.normal(kx2, (320, n_features, seq_len), jnp.float32)
    recon_big, _ = autoencoder_forward(x_big, params, act, tile_n=128)
    recon_big = jax.block_until_ready(recon_big)
    ref_big = reference_forward(x_big, params, act)
    np.testing.assert_allclose(np.asarray(recon_big), np.asarray(ref_big),
                               rtol=1e-5, atol=1e-5)

    print("KERNEL_OK")
</pallas_src>

<mosaic_0001>
module attributes {stable_mosaic.version = 11 : i64} {
  func.func @ae_mlp_kernel(%arg0: i32, %arg1: memref<16x128xf32, #tpu.memory_space<vmem>>, %arg2: memref<12x16xf32, #tpu.memory_space<vmem>>, %arg3: memref<12x1xf32, #tpu.memory_space<vmem>>, %arg4: memref<8x12xf32, #tpu.memory_space<vmem>>, %arg5: memref<8x1xf32, #tpu.memory_space<vmem>>, %arg6: memref<4x8xf32, #tpu.memory_space<vmem>>, %arg7: memref<4x1xf32, #tpu.memory_space<vmem>>, %arg8: memref<8x4xf32, #tpu.memory_space<vmem>>, %arg9: memref<8x1xf32, #tpu.memory_space<vmem>>, %arg10: memref<12x8xf32, #tpu.memory_space<vmem>>, %arg11: memref<12x1xf32, #tpu.memory_space<vmem>>, %arg12: memref<16x12xf32, #tpu.memory_space<vmem>>, %arg13: memref<16x1xf32, #tpu.memory_space<vmem>>, %arg14: memref<16x128xf32, #tpu.memory_space<vmem>>) attributes {dimension_semantics = [#tpu.dimension_semantics<parallel>], iteration_bounds = array<i64: 1>, scalar_prefetch = 0 : i64, scratch_operands = 0 : i64, tpu.core_type = #tpu.core_type<tc>, window_params = [{transform_indices = @transform_0, window_bounds = array<i64: 16, 128>}, {pipeline_mode = #tpu.pipeline_mode<synchronous>, transform_indices = @transform_1, window_bounds = array<i64: 12, 16>}, {pipeline_mode = #tpu.pipeline_mode<synchronous>, transform_indices = @transform_2, window_bounds = array<i64: 12, 1>}, {pipeline_mode = #tpu.pipeline_mode<synchronous>, transform_indices = @transform_3, window_bounds = array<i64: 8, 12>}, {pipeline_mode = #tpu.pipeline_mode<synchronous>, transform_indices = @transform_4, window_bounds = array<i64: 8, 1>}, {pipeline_mode = #tpu.pipeline_mode<synchronous>, transform_indices = @transform_5, window_bounds = array<i64: 4, 8>}, {pipeline_mode = #tpu.pipeline_mode<synchronous>, transform_indices = @transform_6, window_bounds = array<i64: 4, 1>}, {pipeline_mode = #tpu.pipeline_mode<synchronous>, transform_indices = @transform_7, window_bounds = array<i64: 8, 4>}, {pipeline_mode = #tpu.pipeline_mode<synchronous>, transform_indices = @transform_8, window_bounds = array<i64: 8, 1>}, {pipeline_mode = #tpu.pipeline_mode<synchronous>, transform_indices = @transform_9, window_bounds = array<i64: 12, 8>}, {pipeline_mode = #tpu.pipeline_mode<synchronous>, transform_indices = @transform_10, window_bounds = array<i64: 12, 1>}, {pipeline_mode = #tpu.pipeline_mode<synchronous>, transform_indices = @transform_11, window_bounds = array<i64: 16, 12>}, {pipeline_mode = #tpu.pipeline_mode<synchronous>, transform_indices = @transform_12, window_bounds = array<i64: 16, 1>}, {transform_indices = @transform_13, window_bounds = array<i64: 16, 128>}]} {
    %c0 = arith.constant 0 : index
    %c0_0 = arith.constant 0 : index
    %0 = vector.load %arg1[%c0, %c0_0] : memref<16x128xf32, #tpu.memory_space<vmem>>, vector<16x128xf32>
    %c0_1 = arith.constant 0 : index
    %c0_2 = arith.constant 0 : index
    %1 = vector.load %arg2[%c0_1, %c0_2] : memref<12x16xf32, #tpu.memory_space<vmem>>, vector<12x16xf32>
    %c0_3 = arith.constant 0 : index
    %c0_4 = arith.constant 0 : index
    %2 = vector.load %arg3[%c0_3, %c0_4] : memref<12x1xf32, #tpu.memory_space<vmem>>, vector<12x1xf32>
    %cst = arith.constant dense<0.000000e+00> : vector<12x128xf32>
    %3 = tpu.matmul %1, %0, %cst {dimension_numbers = #tpu.dot_dimension_numbers<[1], [0], [0], [1], [0, 0, 1, 1], [], []>} : vector<12x16xf32>, vector<16x128xf32>, vector<12x128xf32> -> vector<12x128xf32>
    %4 = vector.broadcast %2 : vector<12x1xf32> to vector<12x128xf32>
    %5 = arith.addf %3, %4 : vector<12x128xf32>
    %6 = math.tanh %5 : vector<12x128xf32>
    %c0_5 = arith.constant 0 : index
    %c0_6 = arith.constant 0 : index
    %7 = vector.load %arg4[%c0_5, %c0_6] : memref<8x12xf32, #tpu.memory_space<vmem>>, vector<8x12xf32>
    %c0_7 = arith.constant 0 : index
    %c0_8 = arith.constant 0 : index
    %8 = vector.load %arg5[%c0_7, %c0_8] : memref<8x1xf32, #tpu.memory_space<vmem>>, vector<8x1xf32>
    %cst_9 = arith.constant dense<0.000000e+00> : vector<8x128xf32>
    %9 = tpu.matmul %7, %6, %cst_9 {dimension_numbers = #tpu.dot_dimension_numbers<[1], [0], [0], [1], [0, 0, 1, 1], [], []>} : vector<8x12xf32>, vector<12x128xf32>, vector<8x128xf32> -> vector<8x128xf32>
    %10 = vector.broadcast %8 : vector<8x1xf32> to vector<8x128xf32>
    %11 = arith.addf %9, %10 : vector<8x128xf32>
    %12 = math.tanh %11 : vector<8x128xf32>
    %c0_10 = arith.constant 0 : index
    %c0_11 = arith.constant 0 : index
    %13 = vector.load %arg6[%c0_10, %c0_11] : memref<4x8xf32, #tpu.memory_space<vmem>>, vector<4x8xf32>
    %c0_12 = arith.constant 0 : index
    %c0_13 = arith.constant 0 : index
    %14 = vector.load %arg7[%c0_12, %c0_13] : memref<4x1xf32, #tpu.memory_space<vmem>>, vector<4x1xf32>
    %cst_14 = arith.constant dense<0.000000e+00> : vector<4x128xf32>
    %15 = tpu.matmul %13, %12, %cst_14 {dimension_numbers = #tpu.dot_dimension_numbers<[1], [0], [0], [1], [0, 0, 1, 1], [], []>} : vector<4x8xf32>, vector<8x128xf32>, vector<4x128xf32> -> vector<4x128xf32>
    %16 = vector.broadcast %14 : vector<4x1xf32> to vector<4x128xf32>
    %17 = arith.addf %15, %16 : vector<4x128xf32>
    %18 = math.tanh %17 : vector<4x128xf32>
    %c0_15 = arith.constant 0 : index
    %c0_16 = arith.constant 0 : index
    %19 = vector.load %arg8[%c0_15, %c0_16] : memref<8x4xf32, #tpu.memory_space<vmem>>, vector<8x4xf32>
    %c0_17 = arith.constant 0 : index
    %c0_18 = arith.constant 0 : index
    %20 = vector.load %arg9[%c0_17, %c0_18] : memref<8x1xf32, #tpu.memory_space<vmem>>, vector<8x1xf32>
    %cst_19 = arith.constant dense<0.000000e+00> : vector<8x128xf32>
    %21 = tpu.matmul %19, %18, %cst_19 {dimension_numbers = #tpu.dot_dimension_numbers<[1], [0], [0], [1], [0, 0, 1, 1], [], []>} : vector<8x4xf32>, vector<4x128xf32>, vector<8x128xf32> -> vector<8x128xf32>
    %22 = vector.broadcast %20 : vector<8x1xf32> to vector<8x128xf32>
    %23 = arith.addf %21, %22 : vector<8x128xf32>
    %24 = math.tanh %23 : vector<8x128xf32>
    %c0_20 = arith.constant 0 : index
    %c0_21 = arith.constant 0 : index
    %25 = vector.load %arg10[%c0_20, %c0_21] : memref<12x8xf32, #tpu.memory_space<vmem>>, vector<12x8xf32>
    %c0_22 = arith.constant 0 : index
    %c0_23 = arith.constant 0 : index
    %26 = vector.load %arg11[%c0_22, %c0_23] : memref<12x1xf32, #tpu.memory_space<vmem>>, vector<12x1xf32>
    %cst_24 = arith.constant dense<0.000000e+00> : vector<12x128xf32>
    %27 = tpu.matmul %25, %24, %cst_24 {dimension_numbers = #tpu.dot_dimension_numbers<[1], [0], [0], [1], [0, 0, 1, 1], [], []>} : vector<12x8xf32>, vector<8x128xf32>, vector<12x128xf32> -> vector<12x128xf32>
    %28 = vector.broadcast %26 : vector<12x1xf32> to vector<12x128xf32>
    %29 = arith.addf %27, %28 : vector<12x128xf32>
    %30 = math.tanh %29 : vector<12x128xf32>
    %c0_25 = arith.constant 0 : index
    %c0_26 = arith.constant 0 : index
    %31 = vector.load %arg12[%c0_25, %c0_26] : memref<16x12xf32, #tpu.memory_space<vmem>>, vector<16x12xf32>
    %c0_27 = arith.constant 0 : index
    %c0_28 = arith.constant 0 : index
    %32 = vector.load %arg13[%c0_27, %c0_28] : memref<16x1xf32, #tpu.memory_space<vmem>>, vector<16x1xf32>
    %cst_29 = arith.constant dense<0.000000e+00> : vector<16x128xf32>
    %33 = tpu.matmul %31, %30, %cst_29 {dimension_numbers = #tpu.dot_dimension_numbers<[1], [0], [0], [1], [0, 0, 1, 1], [], []>} : vector<16x12xf32>, vector<12x128xf32>, vector<16x128xf32> -> vector<16x128xf32>
    %34 = vector.broadcast %32 : vector<16x1xf32> to vector<16x128xf32>
    %35 = arith.addf %33, %34 : vector<16x128xf32>
    %36 = math.tanh %35 : vector<16x128xf32>
    %c0_30 = arith.constant 0 : index
    %c0_31 = arith.constant 0 : index
    %37 = vector.load %arg14[%c0_30, %c0_31] : memref<16x128xf32, #tpu.memory_space<vmem>>, vector<16x128xf32>
    tpu.vector_store %arg14[%c0_30, %c0_31], %36 {strides = array<i32>} : memref<16x128xf32, #tpu.memory_space<vmem>>, vector<16x128xf32>,
    return
  }
  func.func @transform_0(%arg0: i32) -> (i32, i32) {
    %c0_i32 = arith.constant 0 : i32
    %c0_i32_0 = arith.constant 0 : i32
    return %c0_i32, %arg0 : i32, i32
  }
  func.func @transform_1(%arg0: i32) -> (i32, i32) {
    %c0_i32 = arith.constant 0 : i32
    %c0_i32_0 = arith.constant 0 : i32
    %c0_i32_1 = arith.constant 0 : i32
    return %c0_i32, %c0_i32_0 : i32, i32
  }
  func.func @transform_2(%arg0: i32) -> (i32, i32) {
    %c0_i32 = arith.constant 0 : i32
    %c0_i32_0 = arith.constant 0 : i32
    %c0_i32_1 = arith.constant 0 : i32
    return %c0_i32, %c0_i32_0 : i32, i32
  }
  func.func @transform_3(%arg0: i32) -> (i32, i32) {
    %c0_i32 = arith.constant 0 : i32
    %c0_i32_0 = arith.constant 0 : i32
    %c0_i32_1 = arith.constant 0 : i32
    return %c0_i32, %c0_i32_0 : i32, i32
  }
  func.func @transform_4(%arg0: i32) -> (i32, i32) {
    %c0_i32 = arith.constant 0 : i32
    %c0_i32_0 = arith.constant 0 : i32
    %c0_i32_1 = arith.constant 0 : i32
    return %c0_i32, %c0_i32_0 : i32, i32
  }
  func.func @transform_5(%arg0: i32) -> (i32, i32) {
    %c0_i32 = arith.constant 0 : i32
    %c0_i32_0 = arith.constant 0 : i32
    %c0_i32_1 = arith.constant 0 : i32
    return %c0_i32, %c0_i32_0 : i32, i32
  }
  func.func @transform_6(%arg0: i32) -> (i32, i32) {
    %c0_i32 = arith.constant 0 : i32
    %c0_i32_0 = arith.constant 0 : i32
    %c0_i32_1 = arith.constant 0 : i32
    return %c0_i32, %c0_i32_0 : i32, i32
  }
  func.func @transform_7(%arg0: i32) -> (i32, i32) {
    %c0_i32 = arith.constant 0 : i32
    %c0_i32_0 = arith.constant 0 : i32
    %c0_i32_1 = arith.constant 0 : i32
    return %c0_i32, %c0_i32_0 : i32, i32
  }
  func.func @transform_8(%arg0: i32) -> (i32, i32) {
    %c0_i32 = arith.constant 0 : i32
    %c0_i32_0 = arith.constant 0 : i32
    %c0_i32_1 = arith.constant 0 : i32
    return %c0_i32, %c0_i32_0 : i32, i32
  }
  func.func @transform_9(%arg0: i32) -> (i32, i32) {
    %c0_i32 = arith.constant 0 : i32
    %c0_i32_0 = arith.constant 0 : i32
    %c0_i32_1 = arith.constant 0 : i32
    return %c0_i32, %c0_i32_0 : i32, i32
  }
  func.func @transform_10(%arg0: i32) -> (i32, i32) {
    %c0_i32 = arith.constant 0 : i32
    %c0_i32_0 = arith.constant 0 : i32
    %c0_i32_1 = arith.constant 0 : i32
    return %c0_i32, %c0_i32_0 : i32, i32
  }
  func.func @transform_11(%arg0: i32) -> (i32, i32) {
    %c0_i32 = arith.constant 0 : i32
    %c0_i32_0 = arith.constant 0 : i32
    %c0_i32_1 = arith.constant 0 : i32
    return %c0_i32, %c0_i32_0 : i32, i32
  }
  func.func @transform_12(%arg0: i32) -> (i32, i32) {
    %c0_i32 = arith.constant 0 : i32
    %c0_i32_0 = arith.constant 0 : i32
    %c0_i32_1 = arith.constant 0 : i32
    return %c0_i32, %c0_i32_0 : i32, i32
  }
  func.func @transform_13(%arg0: i32) -> (i32, i32) {
    %c0_i32 = arith.constant 0 : i32
    %c0_i32_0 = arith.constant 0 : i32
    return %c0_i32, %arg0 : i32, i32
  }
}

</mosaic_0001>

<llo_original>
// kernel: tpu_custom_call.1
$region0: #{tpu_custom_call.1}
  #allocation0 [shape = 'u32[]', space=smem, size = 0x4, offset = 0x4, fixed_abs, tag = 'smem constant byte address 0x4 - core index']
  #allocation1 [shape = 'u32[72,128]{1,0:T(1,128)}', space=vmem, size = 0x9000, scoped, tag = 'internal scratch']
  %s0 = inlined_call_operand.vmem [shape: f32[16,128], index: 0, kind: input, shape index: {}]
  %s1 = inlined_call_operand.vmem [shape: f32[12,16], index: 1, kind: input, shape index: {}]
  %s2 = inlined_call_operand.vmem [shape: f32[12,1], index: 2, kind: input, shape index: {}]
  %s3 = inlined_call_operand.vmem [shape: f32[8,12], index: 3, kind: input, shape index: {}]
  %s4 = inlined_call_operand.vmem [shape: f32[8,1], index: 4, kind: input, shape index: {}]
  %s5 = inlined_call_operand.vmem [shape: f32[4,8], index: 5, kind: input, shape index: {}]
  %s6 = inlined_call_operand.vmem [shape: f32[4,1], index: 6, kind: input, shape index: {}]
  %s7 = inlined_call_operand.vmem [shape: f32[8,4], index: 7, kind: input, shape index: {}]
  %s8 = inlined_call_operand.vmem [shape: f32[8,1], index: 8, kind: input, shape index: {}]
  %s9 = inlined_call_operand.vmem [shape: f32[12,8], index: 9, kind: input, shape index: {}]
  %s10 = inlined_call_operand.vmem [shape: f32[12,1], index: 10, kind: input, shape index: {}]
  %s11 = inlined_call_operand.vmem [shape: f32[16,12], index: 11, kind: input, shape index: {}]
  %s12 = inlined_call_operand.vmem [shape: f32[16,1], index: 12, kind: input, shape index: {}]
  %s13 = inlined_call_operand.hbm [shape: f32[16,128], index: 13, kind: output, shape index: {}]
  %s14 = sld [smem:[#allocation0]]
  $region62: #{tpu_custom_call.1} parent=0
    _
  %s16 = ssub.s32 1, %s14
  %s17 = scalar_select 0, %s16, %s14
  $region1: #{tpu_custom_call.1} parent=0
    #allocation2 [shape = 'u8[8192]{0}', space=vmem, size = 0x2000, scoped, tag = 'output window, operand 0, single buffered']
    #allocation3 [shape = 's32[1]{0}', space=sflag, size = 0x4, scoped, tag = 'scoped memory for tpu_custom_call.1']
    %18 = vsyncpa [#allocation3], 0
    // Predicated region
    $region2: #{tpu_custom_call.1} parent=1 // pred_check
      _
    $region3: #{tpu_custom_call.1} parent=1 // pred_check_branch
      %20 = sbr.rel (0) target = $region5
    $region4: #{tpu_custom_call.1} parent=1 // pred_region
      _
    $region5: #{tpu_custom_call.1} parent=1 // pred_fallthru
      _
    // Predicated region
    $region6: #{tpu_custom_call.1} parent=1 // pred_check
      _
    $region7: #{tpu_custom_call.1} parent=1 // pred_check_branch
      %22 = sbr.rel (0) target = $region9
    $region8: #{tpu_custom_call.1} parent=1 // pred_region
      _
    $region9: #{tpu_custom_call.1} parent=1 // pred_fallthru
      _
    // Predicated region
    $region10: #{tpu_custom_call.1} parent=1 // pred_check
      _
    $region11: #{tpu_custom_call.1} parent=1 // pred_check_branch
      %24 = sbr.rel (0) target = $region13
    $region12: #{tpu_custom_call.1} parent=1 // pred_region
      _
    $region13: #{tpu_custom_call.1} parent=1 // pred_fallthru
      _
    // Predicated region
    $region14: #{tpu_custom_call.1} parent=1 // pred_check
      _
    $region15: #{tpu_custom_call.1} parent=1 // pred_check_branch
      %26 = sbr.rel (0) target = $region17
    $region16: #{tpu_custom_call.1} parent=1 // pred_region
      _
    $region17: #{tpu_custom_call.1} parent=1 // pred_fallthru
      _
    // Predicated region
    $region18: #{tpu_custom_call.1} parent=1 // pred_check
      _
    $region19: #{tpu_custom_call.1} parent=1 // pred_check_branch
      %28 = sbr.rel (0) target = $region21
    $region20: #{tpu_custom_call.1} parent=1 // pred_region
      _
    $region21: #{tpu_custom_call.1} parent=1 // pred_fallthru
      _
    // Predicated region
    $region22: #{tpu_custom_call.1} parent=1 // pred_check
      _
    $region23: #{tpu_custom_call.1} parent=1 // pred_check_branch
      %30 = sbr.rel (0) target = $region25
    $region24: #{tpu_custom_call.1} parent=1 // pred_region
      _
    $region25: #{tpu_custom_call.1} parent=1 // pred_fallthru
      _
    // Predicated region
    $region26: #{tpu_custom_call.1} parent=1 // pred_check
      _
    $region27: #{tpu_custom_call.1} parent=1 // pred_check_branch
      %32 = sbr.rel (0) target = $region29
    $region28: #{tpu_custom_call.1} parent=1 // pred_region
      _
    $region29: #{tpu_custom_call.1} parent=1 // pred_fallthru
      _
    // Predicated region
    $region30: #{tpu_custom_call.1} parent=1 // pred_check
      _
    $region31: #{tpu_custom_call.1} parent=1 // pred_check_branch
      %34 = sbr.rel (0) target = $region33
    $region32: #{tpu_custom_call.1} parent=1 // pred_region
      _
    $region33: #{tpu_custom_call.1} parent=1 // pred_fallthru
      _
    // Predicated region
    $region34: #{tpu_custom_call.1} parent=1 // pred_check
      _
    $region35: #{tpu_custom_call.1} parent=1 // pred_check_branch
      %36 = sbr.rel (0) target = $region37
    $region36: #{tpu_custom_call.1} parent=1 // pred_region
      _
    $region37: #{tpu_custom_call.1} parent=1 // pred_fallthru
      _
    // Predicated region
    $region38: #{tpu_custom_call.1} parent=1 // pred_check
      _
    $region39: #{tpu_custom_call.1} parent=1 // pred_check_branch
      %38 = sbr.rel (0) target = $region41
    $region40: #{tpu_custom_call.1} parent=1 // pred_region
      _
    $region41: #{tpu_custom_call.1} parent=1 // pred_fallthru
      _
    // Predicated region
    $region42: #{tpu_custom_call.1} parent=1 // pred_check
      _
    $region43: #{tpu_custom_call.1} parent=1 // pred_check_branch
      %40 = sbr.rel (0) target = $region45
    $region44: #{tpu_custom_call.1} parent=1 // pred_region
      _
    $region45: #{tpu_custom_call.1} parent=1 // pred_fallthru
      _
    // Predicated region
    $region46: #{tpu_custom_call.1} parent=1 // pred_check
      _
    $region47: #{tpu_custom_call.1} parent=1 // pred_check_branch
      %42 = sbr.rel (0) target = $region49
    $region48: #{tpu_custom_call.1} parent=1 // pred_region
      _
    $region49: #{tpu_custom_call.1} parent=1 // pred_fallthru
      _
    // Predicated region
    $region50: #{tpu_custom_call.1} parent=1 // pred_check
      _
    $region51: #{tpu_custom_call.1} parent=1 // pred_check_branch
      %44 = sbr.rel (0) target = $region53
    $region52: #{tpu_custom_call.1} parent=1 // pred_region
      _
    $region53: #{tpu_custom_call.1} parent=1 // pred_fallthru
      _
    %v45 = vld [vmem:[%s0] sm:$0xff]
    %v46 = vld [vmem:[%s0 + $0x8] sm:$0xff]
    %v47 = vld [vmem:[%s1] sm:$0xff]
    %v48 = vld [vmem:[%s1 + $0x8] sm:$0xf]
    %v49 = vld [vmem:[%s2] sm:$0xff]
    %v50 = vld [vmem:[%s2 + $0x8] sm:$0xf]
    %52 = vset.pattern.permute.xlu0 0
    %53 = vperm.xlu0 %52, %v49
    %v54 = vpop.permute.xlu0 %53
    %57 = vset.pattern.permute.xlu0 0
    %58 = vperm.xlu0 %57, %v50
    %v59 = vpop.permute.xlu0 %58
    %vm61 = vcmask 130048
    %v63 = vsel %vm61, %v47, 0
    %v66 = vsel %vm61, %v48, 0
    %68 = vmatpush.msra.mxu0 0.0
    %69 = vmatpush.msra.mxu0 0.0
    %70 = vmatpush.msra.mxu0 0.0
    %71 = vmatpush.msra.mxu0 0.0
    %72 = vmatpush.msra.mxu0 0.0
    %73 = vmatpush.msra.mxu0 0.0
    %74 = vmatpush.msra.mxu0 0.0
    %75 = vmatpush.msra.mxu0 0.0
    %76 = vmatpush.msra.mxu0 0.0
    %77 = vmatpush.msra.mxu0 0.0
    %78 = vmatpush.msra.mxu0 0.0
    %79 = vmatpush.msra.mxu0 0.0
    %80 = vmatpush.msra.mxu0 0.0
    %81 = vmatpush.msra.mxu0 0.0
    %82 = vmatpush.msra.mxu0 %v46
    %83 = vmatpush.msra.mxu0 %v45
    %84 = vmatmul.f32.gmra.mxu0 %v63
    %v85 = vpop.f32.mrf.mxu0
    %v86 = vadd.f32 %v54, %v85
    %87 = vmatmul.f32.gmra.mxu0 %v66
    %v88 = vpop.f32.mrf.mxu0
    %v89 = vadd.f32 %v59, %v88
    %90 = vdwg.mxu0
    %v91 = vtanh.pop %v86
    %v92 = vtanh.pop %v89
    %v93 = vld [vmem:[%s3] sm:$0xff]
    %v94 = vld [vmem:[%s4] sm:$0xff]
    %96 = vset.pattern.permute.xlu0 0
    %97 = vperm.xlu0 %96, %v94
    %v98 = vpop.permute.xlu0 %97
    %vm100 = vcmask 97280
    %v102 = vsel %vm100, %v93, 0
    %vm104 = vcmask 1043456
    %v106 = vsel %vm104, %v92, 0
    %108 = vmatpush.msra.mxu0 0.0
    %109 = vmatpush.msra.mxu0 0.0
    %110 = vmatpush.msra.mxu0 0.0
    %111 = vmatpush.msra.mxu0 0.0
    %112 = vmatpush.msra.mxu0 0.0
    %113 = vmatpush.msra.mxu0 0.0
    %114 = vmatpush.msra.mxu0 0.0
    %115 = vmatpush.msra.mxu0 0.0
    %116 = vmatpush.msra.mxu0 0.0
    %117 = vmatpush.msra.mxu0 0.0
    %118 = vmatpush.msra.mxu0 0.0
    %119 = vmatpush.msra.mxu0 0.0
    %120 = vmatpush.msra.mxu0 0.0
    %121 = vmatpush.msra.mxu0 0.0
    %122 = vmatpush.msra.mxu0 %v106
    %123 = vmatpush.msra.mxu0 %v91
    %124 = vmatmul.f32.gmra.mxu0 %v102
    %v125 = vpop.f32.mrf.mxu0
    %v126 = vadd.f32 %v98, %v125
    %127 = vdwg.mxu0
    %v128 = vtanh.pop %v126
    %v129 = vld [vmem:[%s5] sm:$0xf]
    %v130 = vld [vmem:[%s6] sm:$0xf]
    %132 = vset.pattern.permute.xlu0 0
    %133 = vperm.xlu0 %132, %v130
    %v134 = vpop.permute.xlu0 %133
    %vm136 = vcmask 64512
    %v138 = vsel %vm136, %v129, 0
    %140 = vmatpush.msra.mxu0 0.0
    %141 = vmatpush.msra.mxu0 0.0
    %142 = vmatpush.msra.mxu0 0.0
    %143 = vmatpush.msra.mxu0 0.0
    %144 = vmatpush.msra.mxu0 0.0
    %145 = vmatpush.msra.mxu0 0.0
    %146 = vmatpush.msra.mxu0 0.0
    %147 = vmatpush.msra.mxu0 0.0
    %148 = vmatpush.msra.mxu0 0.0
    %149 = vmatpush.msra.mxu0 0.0
    %150 = vmatpush.msra.mxu0 0.0
    %151 = vmatpush.msra.mxu0 0.0
    %152 = vmatpush.msra.mxu0 0.0
    %153 = vmatpush.msra.mxu0 0.0
    %154 = vmatpush.msra.mxu0 0.0
    %155 = vmatpush.msra.mxu0 %v128
    %156 = vmatmul.f32.gmra.mxu0 %v138
    %v157 = vpop.f32.mrf.mxu0
    %v158 = vadd.f32 %v134, %v157
    %159 = vdwg.mxu0
    %v160 = vtanh.pop %v158
    %v161 = vld [vmem:[%s7] sm:$0xff]
    %v162 = vld [vmem:[%s8] sm:$0xff]
    %164 = vset.pattern.permute.xlu0 0
    %165 = vperm.xlu0 %164, %v162
    %v166 = vpop.permute.xlu0 %165
    %vm168 = vcmask 31744
    %v170 = vsel %vm168, %v161, 0
    %v173 = vsel %vm104, %v160, 0
    %175 = vmatpush.msra.mxu0 0.0
    %176 = vmatpush.msra.mxu0 0.0
    %177 = vmatpush.msra.mxu0 0.0
    %178 = vmatpush.msra.mxu0 0.0
    %179 = vmatpush.msra.mxu0 0.0
    %180 = vmatpush.msra.mxu0 0.0
    %181 = vmatpush.msra.mxu0 0.0
    %182 = vmatpush.msra.mxu0 0.0
    %183 = vmatpush.msra.mxu0 0.0
    %184 = vmatpush.msra.mxu0 0.0
    %185 = vmatpush.msra.mxu0 0.0
    %186 = vmatpush.msra.mxu0 0.0
    %187 = vmatpush.msra.mxu0 0.0
    %188 = vmatpush.msra.mxu0 0.0
    %189 = vmatpush.msra.mxu0 0.0
    %190 = vmatpush.msra.mxu0 %v173
    %191 = vmatmul.f32.gmra.mxu0 %v170
    %v192 = vpop.f32.mrf.mxu0
    %v193 = vadd.f32 %v166, %v192
    %194 = vdwg.mxu0
    %v195 = vtanh.pop %v193
    %v196 = vld [vmem:[%s9] sm:$0xff]
    %v197 = vld [vmem:[%s9 + $0x8] sm:$0xf]
    %v198 = vld [vmem:[%s10] sm:$0xff]
    %v199 = vld [vmem:[%s10 + $0x8] sm:$0xf]
    %201 = vset.pattern.permute.xlu0 0
    %202 = vperm.xlu0 %201, %v198
    %v203 = vpop.permute.xlu0 %202
    %206 = vset.pattern.permute.xlu0 0
    %207 = vperm.xlu0 %206, %v199
    %v208 = vpop.permute.xlu0 %207
    %v211 = vsel %vm136, %v196, 0
    %v214 = vsel %vm136, %v197, 0
    %216 = vmatpush.msra.mxu0 0.0
    %217 = vmatpush.msra.mxu0 0.0
    %218 = vmatpush.msra.mxu0 0.0
    %219 = vmatpush.msra.mxu0 0.0
    %220 = vmatpush.msra.mxu0 0.0
    %221 = vmatpush.msra.mxu0 0.0
    %222 = vmatpush.msra.mxu0 0.0
    %223 = vmatpush.msra.mxu0 0.0
    %224 = vmatpush.msra.mxu0 0.0
    %225 = vmatpush.msra.mxu0 0.0
    %226 = vmatpush.msra.mxu0 0.0
    %227 = vmatpush.msra.mxu0 0.0
    %228 = vmatpush.msra.mxu0 0.0
    %229 = vmatpush.msra.mxu0 0.0
    %230 = vmatpush.msra.mxu0 0.0
    %231 = vmatpush.msra.mxu0 %v195
    %232 = vmatmul.f32.gmra.mxu0 %v211
    %v233 = vpop.f32.mrf.mxu0
    %v234 = vadd.f32 %v203, %v233
    %235 = vmatmul.f32.gmra.mxu0 %v214
    %v236 = vpop.f32.mrf.mxu0
    %v237 = vadd.f32 %v208, %v236
    %238 = vdwg.mxu0
    %v239 = vtanh.pop %v234
    %v240 = vtanh.pop %v237
    %v241 = vld [vmem:[%s11] sm:$0xff]
    %v242 = vld [vmem:[%s11 + $0x8] sm:$0xff]
    %v243 = vld [vmem:[%s12] sm:$0xff]
    %v244 = vld [vmem:[%s12 + $0x8] sm:$0xff]
    %246 = vset.pattern.permute.xlu0 0
    %247 = vperm.xlu0 %246, %v243
    %v248 = vpop.permute.xlu0 %247
    %251 = vset.pattern.permute.xlu0 0
    %252 = vperm.xlu0 %251, %v244
    %v253 = vpop.permute.xlu0 %252
    %v256 = vsel %vm100, %v241, 0
    %v259 = vsel %vm100, %v242, 0
    %v262 = vsel %vm104, %v240, 0
    %264 = vmatpush.msra.mxu0 0.0
    %265 = vmatpush.msra.mxu0 0.0
    %266 = vmatpush.msra.mxu0 0.0
    %267 = vmatpush.msra.mxu0 0.0
    %268 = vmatpush.msra.mxu0 0.0
    %269 = vmatpush.msra.mxu0 0.0
    %270 = vmatpush.msra.mxu0 0.0
    %271 = vmatpush.msra.mxu0 0.0
    %272 = vmatpush.msra.mxu0 0.0
    %273 = vmatpush.msra.mxu0 0.0
    %274 = vmatpush.msra.mxu0 0.0
    %275 = vmatpush.msra.mxu0 0.0
    %276 = vmatpush.msra.mxu0 0.0
    %277 = vmatpush.msra.mxu0 0.0
    %278 = vmatpush.msra.mxu0 %v262
    %279 = vmatpush.msra.mxu0 %v239
    %280 = vmatmul.f32.gmra.mxu0 %v256
    %v281 = vpop.f32.mrf.mxu0
    %v282 = vadd.f32 %v248, %v281
    %283 = vmatmul.f32.gmra.mxu0 %v259
    %v284 = vpop.f32.mrf.mxu0
    %v285 = vadd.f32 %v253, %v284
    %286 = vdwg.mxu0
    %v287 = vtanh.pop %v282
    %v288 = vtanh.pop %v285
    %289 = vst [vmem:[#allocation2] sm:$0xff] %v287
    %290 = vst [vmem:[#allocation2 + $0x8] sm:$0xff] %v288
    // Predicated region
    $region54: #{tpu_custom_call.1} parent=1 // pred_check
      _
    $region55: #{tpu_custom_call.1} parent=1 // pred_check_branch
      %292 = sbr.rel (0) target = $region57
    $region56: #{tpu_custom_call.1} parent=1 // pred_region
      %294 = vsyncadd [#allocation3], 0
      %s295 = sshll.u32 [#allocation2], 4
      %s296 = int_to_ptr.vmem [resolvable:$true] %s295
      %s297 = sshll.u32 %s13, 4
      %s298 = int_to_ptr.hbm [resolvable:$true] %s297
      %303 = dma.vmem_to_hbm [thread:$0]  %s296, 256, %s298, [#allocation3], 128, 128, 8
    $region57: #{tpu_custom_call.1} parent=1 // pred_fallthru
      _
    // Predicated region
    $region58: #{tpu_custom_call.1} parent=1 // pred_check
      _
    $region59: #{tpu_custom_call.1} parent=1 // pred_check_branch
      %305 = sbr.rel (0) target = $region61
    $region60: #{tpu_custom_call.1} parent=1 // pred_region
      %307 = dma.done [#allocation3], 256
    $region61: #{tpu_custom_call.1} parent=1 // pred_fallthru
      _
    %308 = vsyncpa [#allocation3], 1

</llo_original>
